<compile_context>
chip_gen: v7x
topology: tpu7x:2x2x1
jax: 0.10.0
libtpu: 0.0.40
codegen_flags: <defaults>
</compile_context>

<pallas_src>
import functools
import math
from typing import NamedTuple

import numpy as np

import jax
import jax.numpy as jnp
from jax.experimental import pallas as pl
from jax.experimental.pallas import tpu as pltpu


def _round_up(x, m):
    return ((x + m - 1) // m) * m


# ----------------------------------------------------------------------------
# Block-sparse symmetrically-normalized adjacency (exactly what LightGCNConv
# computes), stored as compacted nonzero (tm, tk) tiles + per-row-block tables.
# ----------------------------------------------------------------------------
class BlockSparseAdj(NamedTuple):
    a_tiles: jax.Array       # (n_tiles, tm, tk)  bf16 compacted nonzero A tiles
    a_tile_ids: jax.Array    # (n_row_blocks * max_nnz,) int32 slot into a_tiles
    col_tile_ids: jax.Array  # (n_row_blocks * max_nnz,) int32 emb column tile
    counts: jax.Array        # (n_row_blocks,) int32 nonzero tiles per row block
    n_pad: int
    tm: int
    tk: int
    max_nnz: int


def build_block_sparse_adjacency(edge_index, num_nodes, *, tm, tk,
                                 dtype=jnp.bfloat16):
    from_ = np.asarray(edge_index[0]).astype(np.int64)
    to_ = np.asarray(edge_index[1]).astype(np.int64)

    deg = np.zeros((num_nodes,), np.float64)
    np.add.at(deg, to_, 1.0)
    deg_inv_sqrt = np.where(deg > 0, deg ** -0.5, 0.0)        # inf -> 0
    norm = (deg_inv_sqrt[from_] * deg_inv_sqrt[to_]).astype(np.float32)

    n_pad = _round_up(num_nodes, math.lcm(tm, tk))
    n_row_blocks = n_pad // tm
    n_col_tiles = n_pad // tk

    br = to_ // tm                        # row block of each edge's target
    bc = from_ // tk                      # column tile of each edge's source
    keys = br * n_col_tiles + bc
    uniq_keys = np.unique(keys)
    n_tiles = max(1, int(uniq_keys.size))

    a_tiles = np.zeros((n_tiles, tm, tk), np.float32)
    if keys.size:
        slots = np.searchsorted(uniq_keys, keys)
        np.add.at(a_tiles, (slots, to_ % tm, from_ % tk), norm)

    counts = np.zeros((n_row_blocks,), np.int32)
    if uniq_keys.size:
        np.add.at(counts, uniq_keys // n_col_tiles, 1)
    max_nnz = max(1, int(counts.max())) if counts.size else 1

    a_ids = np.zeros((n_row_blocks, max_nnz), np.int32)
    col_ids = np.zeros((n_row_blocks, max_nnz), np.int32)
    fill = np.zeros((n_row_blocks,), np.int64)
    for slot, key in enumerate(uniq_keys):
        rb = int(key) // n_col_tiles
        j = int(fill[rb]); fill[rb] += 1
        a_ids[rb, j] = slot
        col_ids[rb, j] = int(key) % n_col_tiles
    # Padding entries keep index 0: their DMAs target a valid (unused) tile and
    # the matmul is skipped in-kernel via `k < counts[i]`.

    return BlockSparseAdj(
        a_tiles=jnp.asarray(a_tiles).astype(dtype),
        a_tile_ids=jnp.asarray(a_ids.reshape(-1), dtype=jnp.int32),
        col_tile_ids=jnp.asarray(col_ids.reshape(-1), dtype=jnp.int32),
        counts=jnp.asarray(counts, dtype=jnp.int32),
        n_pad=int(n_pad), tm=int(tm), tk=int(tk), max_nnz=int(max_nnz))


# ----------------------------------------------------------------------------
# Pallas kernel: one propagation layer over the nonzero A tiles of a row block.
#   new_emb[rows(i)] = sum_{k < counts[i]} A_tile(i,k) @ emb[cols(i,k)]
#   new_acc[rows(i)] = (acc_in[rows(i)] + new_emb[rows(i)]) * inv_scale
# ----------------------------------------------------------------------------
def _prop_kernel(cnt_ref, a_ids_ref, col_ids_ref,       # scalar prefetch (SMEM)
                 a_ref, emb_ref, acc_in_ref,             # inputs (VMEM tiles)
                 *outs_and_scratch, inv_scale, emit_emb):
    if emit_emb:
        new_emb_ref, new_acc_ref, acc_sc = outs_and_scratch
    else:
        new_acc_ref, acc_sc = outs_and_scratch
        new_emb_ref = None
    del a_ids_ref, col_ids_ref  # consumed by the index_maps only

    i = pl.program_id(0)
    k = pl.program_id(1)

    @pl.when(k == 0)
    def _():
        acc_sc[...] = jnp.zeros_like(acc_sc)

    # Skip padded (all-zero) tile slots of this row block.
    @pl.when(k < cnt_ref[i])
    def _():
        # bf16 x bf16 -> f32 accumulate on the MXU.
        acc_sc[...] += jnp.dot(a_ref[...], emb_ref[...],
                               preferred_element_type=jnp.float32)

    @pl.when(k == pl.num_programs(1) - 1)
    def _():
        new_emb = acc_sc[...]
        if emit_emb:
            new_emb_ref[...] = new_emb.astype(new_emb_ref.dtype)
        new_acc_ref[...] = ((acc_in_ref[...] + new_emb) * inv_scale).astype(
            new_acc_ref.dtype)


def _propagate_layer(adj: BlockSparseAdj, emb_bf16, acc_f32, *, inv_scale,
                     emit_emb):
    n_pad, d_pad = acc_f32.shape
    tm, tk, max_nnz = adj.tm, adj.tk, adj.max_nnz
    n_row_blocks = n_pad // tm
    grid = (n_row_blocks, max_nnz)

    kernel = functools.partial(_prop_kernel, inv_scale=inv_scale,
                               emit_emb=emit_emb)

    # index_maps receive (grid idx..., *scalar-prefetch refs) positionally.
    a_spec = pl.BlockSpec(
        (None, tm, tk),
        lambda i, k, cnt, aids, cids: (aids[i * max_nnz + k], 0, 0))
    emb_spec = pl.BlockSpec(
        (tk, d_pad),
        lambda i, k, cnt, aids, cids: (cids[i * max_nnz + k], 0))
    acc_in_spec = pl.BlockSpec((tm, d_pad),
                               lambda i, k, cnt, aids, cids: (i, 0))
    out_row_spec = pl.BlockSpec((tm, d_pad),
                                lambda i, k, cnt, aids, cids: (i, 0))

    if emit_emb:
        out_shape = (jax.ShapeDtypeStruct((n_pad, d_pad), jnp.bfloat16),
                     jax.ShapeDtypeStruct((n_pad, d_pad), jnp.float32))
        out_specs = (out_row_spec, out_row_spec)
    else:
        out_shape = (jax.ShapeDtypeStruct((n_pad, d_pad), jnp.float32),)
        out_specs = (out_row_spec,)

    # Double-buffered per-step VMEM footprint -> explicit scoped-VMEM limit
    # (v5e default is only 16 MiB; keep comfortably under v7x's 64 MiB).
    tile_bytes = (2 * (tm * tk * 2)            # A tile (bf16)
                  + 2 * (tk * d_pad * 2)       # emb tile (bf16)
                  + 2 * (tm * d_pad * 4)       # acc_in tile (f32)
                  + 2 * (tm * d_pad * 4)       # new_acc tile (f32)
                  + (2 * (tm * d_pad * 2) if emit_emb else 0)
                  + tm * d_pad * 4)            # accumulator scratch
    vmem_limit = min(64 * 1024 * 1024, max(32 * 1024 * 1024, 2 * tile_bytes))

    flops = 2 * grid[0] * grid[1] * tm * tk * d_pad
    bytes_accessed = (grid[0] * grid[1] * (tm * tk * 2 + tk * d_pad * 2)
                      + 2 * n_pad * d_pad * 4
                      + (n_pad * d_pad * 2 if emit_emb else 0))

    outs = pl.pallas_call(
        kernel,
        out_shape=out_shape,
        grid_spec=pltpu.PrefetchScalarGridSpec(
            num_scalar_prefetch=3,
            grid=grid,
            in_specs=[a_spec, emb_spec, acc_in_spec],
            out_specs=out_specs,
            scratch_shapes=[pltpu.VMEM((tm, d_pad), jnp.float32)]),
        compiler_params=pltpu.CompilerParams(
            # Row axis first + "parallel" => v7x megacore splits output rows;
            # the tile-loop (reduction) axis stays "arbitrary".
            dimension_semantics=("parallel", "arbitrary"),
            vmem_limit_bytes=vmem_limit),
        cost_estimate=pl.CostEstimate(flops=flops, transcendentals=0,
                                      bytes_accessed=bytes_accessed),
    )(adj.counts, adj.a_tile_ids, adj.col_tile_ids,
      adj.a_tiles, emb_bf16, acc_f32)

    if emit_emb:
        new_emb, new_acc = outs
        return new_emb, new_acc
    new_acc = outs[0] if isinstance(outs, (tuple, list)) else outs
    return None, new_acc


def lightgcn_forward(adj: BlockSparseAdj, emb0, n_layers):
    """Returns mean over [emb0, A emb0, A^2 emb0, ...] (unpadded)."""
    n, d = emb0.shape
    if n_layers == 0:
        return emb0
    n_pad = adj.n_pad
    d_pad = _round_up(max(d, 128), 128)   # lane-dense stores (no vst.msk)

    emb0_p = jnp.zeros((n_pad, d_pad), jnp.float32).at[:n, :d].set(
        emb0.astype(jnp.float32))
    acc = emb0_p                          # running layer sum, kept in f32
    emb = emb0_p.astype(jnp.bfloat16)     # streamed layer embedding in bf16

    for layer in range(n_layers):
        last = layer == n_layers - 1
        inv_scale = 1.0 / (n_layers + 1) if last else 1.0
        new_emb, acc = _propagate_layer(adj, emb, acc, inv_scale=inv_scale,
                                        emit_emb=not last)
        if not last:
            emb = new_emb
    return acc[:n, :d].astype(emb0.dtype)


# ----------------------------------------------------------------------------
# JAX/Pallas port of RecSysGNN with model='lightGCN'.
# ----------------------------------------------------------------------------
class RecSysGNNLightGCN:

    def __init__(self, emb_dim, n_layers, n_users, n_items, key,
                 *, tm=512, tk=2048):
        assert tm % 16 == 0 and tk % 128 == 0, "tiles must be MXU/lane aligned"
        self.emb_dim = emb_dim
        self.n_layers = n_layers
        self.n_users = n_users
        self.n_items = n_items
        self._tm = tm
        self._tk = tk
        n_nodes = n_users + n_items
        # nn.init.normal_(embedding.weight, std=0.1)  (lightGCN branch)
        self.embedding = 0.1 * jax.random.normal(
            key, (n_nodes, emb_dim), dtype=jnp.float32)
        # Cache the block-sparse adjacency across forward calls (edge_index is
        # static in training).
        self._cached_edge_index = None
        self._cached_adj = None

    def _block_sparse_adjacency(self, edge_index):
        if self._cached_adj is None or self._cached_edge_index is not edge_index:
            self._cached_adj = build_block_sparse_adjacency(
                edge_index, self.n_users + self.n_items,
                tm=self._tm, tk=self._tk)
            self._cached_edge_index = edge_index
        return self._cached_adj

    def forward(self, edge_index, edge_attrs=None):
        del edge_attrs  # unused by LightGCNConv
        emb0 = self.embedding
        adj = self._block_sparse_adjacency(edge_index)
        out = lightgcn_forward(adj, emb0, self.n_layers)
        return emb0, out

    def encode_minibatch(self, users, pos_items, neg_items, edge_index,
                         edge_attrs=None):
        emb0, out = self.forward(edge_index, edge_attrs)
        return (out[users], out[pos_items], out[neg_items],
                emb0[users], emb0[pos_items], emb0[neg_items])


# ----------------------------------------------------------------------------
# Pure-JAX reference (edge-wise scatter-add, mirroring MessagePassing aggr='add')
# ----------------------------------------------------------------------------
def reference_forward(embedding, edge_index, n_layers):
    from_, to_ = edge_index[0], edge_index[1]
    n = embedding.shape[0]
    deg = jnp.zeros((n,), embedding.dtype).at[to_].add(1.0)
    dis = jnp.where(deg > 0, deg ** -0.5, 0.0)
    norm = dis[from_] * dis[to_]
    embs = [embedding]
    emb = embedding
    for _ in range(n_layers):
        msg = norm[:, None] * emb[from_]
        emb = jnp.zeros_like(emb).at[to_].add(msg)
        embs.append(emb)
    out = jnp.mean(jnp.stack(embs, axis=0), axis=0)
    return embedding, out


if __name__ == "__main__":
    key = jax.random.PRNGKey(0)
    k_emb, k_edges = jax.random.split(key)

    n_users, n_items = 80, 80
    n_nodes = n_users + n_items
    emb_dim = 32
    n_layers = 3

    # Deterministic bipartite user-item interactions, both directions (undirected).
    n_inter = 400
    u = jax.random.randint(k_edges, (n_inter,), 0, n_users)
    i = jax.random.randint(jax.random.fold_in(k_edges, 1), (n_inter,), 0,
                           n_items) + n_users
    from_ = jnp.concatenate([u, i]).astype(jnp.int32)
    to_ = jnp.concatenate([i, u]).astype(jnp.int32)
    edge_index = jnp.stack([from_, to_], axis=0)          # (2, E)

    # Small tiles so the tiny demo graph exercises several row blocks, multiple
    # nonzero column tiles per row block AND the zero-tile skip path.  Real
    # deployments keep the production defaults (tm=512, tk=2048).
    model = RecSysGNNLightGCN(emb_dim, n_layers, n_users, n_items, k_emb,
                              tm=64, tk=128)

    emb0, out = model.forward(edge_index, edge_attrs=None)
    out = jax.block_until_ready(out)

    # Validate against the edge-wise scatter-add reference.  Tolerance is
    # loosened because A_norm tiles and layer embeddings are stored in bf16
    # (all accumulation stays f32).
    ref_emb0, ref_out = reference_forward(model.embedding, edge_index, n_layers)
    assert out.shape == (n_nodes, emb_dim) and emb0.shape == (n_nodes, emb_dim)
    max_diff = float(jnp.max(jnp.abs(out - ref_out)))
    assert jnp.allclose(out, ref_out, atol=1e-2, rtol=5e-2), max_diff
    assert jnp.allclose(emb0, ref_emb0)

    # Exercise encode_minibatch (gathers are plain-JAX glue) — uses cached adj.
    users = jnp.array([0, 1], dtype=jnp.int32)
    pos = jnp.array([n_users + 0, n_users + 1], dtype=jnp.int32)
    neg = jnp.array([n_users + 2, n_users + 3], dtype=jnp.int32)
    mb = model.encode_minibatch(users, pos, neg, edge_index)
    jax.block_until_ready(mb)

    # TODO(synk): NGCF / knnNGCF / hyperGCN conv variants (extra linear layers,
    # edge-attr gating, dropout) are not implemented; only model='lightGCN'.
    print("KERNEL_OK")
</pallas_src>

<mosaic_0001>
module attributes {stable_mosaic.version = 11 : i64} {
  func.func @_prop_kernel(%arg0: i32, %arg1: i32, %arg2: memref<4xi32, #tpu.memory_space<smem>>, %arg3: memref<8xi32, #tpu.memory_space<smem>>, %arg4: memref<8xi32, #tpu.memory_space<smem>>, %arg5: memref<1x64x128xbf16, #tpu.memory_space<vmem>>, %arg6: memref<128x128xbf16, #tpu.memory_space<vmem>>, %arg7: memref<64x128xf32, #tpu.memory_space<vmem>>, %arg8: memref<64x128xbf16, #tpu.memory_space<vmem>>, %arg9: memref<64x128xf32, #tpu.memory_space<vmem>>, %arg10: memref<64x128xf32, #tpu.memory_space<vmem>>) attributes {dimension_semantics = [#tpu.dimension_semantics<parallel>, #tpu.dimension_semantics<arbitrary>], iteration_bounds = array<i64: 4, 2>, scalar_prefetch = 3 : i64, scratch_operands = 1 : i64, tpu.core_type = #tpu.core_type<tc>, window_params = [{transform_indices = @transform_0, window_bounds = array<i64: 1, 64, 128>}, {transform_indices = @transform_1, window_bounds = array<i64: 128, 128>}, {transform_indices = @transform_2, window_bounds = array<i64: 64, 128>}, {transform_indices = @transform_3, window_bounds = array<i64: 64, 128>}, {transform_indices = @transform_4, window_bounds = array<i64: 64, 128>}]} {
    %c0_i32 = arith.constant 0 : i32
    %0 = arith.cmpi eq, %arg1, %c0_i32 : i32
    %1 = arith.extui %0 : i1 to i32
    %c0_i32_0 = arith.constant 0 : i32
    %2 = arith.cmpi ne, %1, %c0_i32_0 : i32
    scf.if %2 {
      %cst = arith.constant 0.000000e+00 : f32
      %11 = vector.broadcast %cst : f32 to vector<64x128xf32>
      %c0 = arith.constant 0 : index
      %c0_3 = arith.constant 0 : index
      %12 = vector.load %arg10[%c0, %c0_3] : memref<64x128xf32, #tpu.memory_space<vmem>>, vector<64x128xf32>
      tpu.vector_store %arg10[%c0, %c0_3], %11 {strides = array<i32>} : memref<64x128xf32, #tpu.memory_space<vmem>>, vector<64x128xf32>,
    } else {
    }
    %3 = arith.index_cast %arg0 : i32 to index
    %4 = memref.load %arg2[%3] : memref<4xi32, #tpu.memory_space<smem>>
    %5 = arith.cmpi slt, %arg1, %4 : i32
    %6 = arith.extui %5 : i1 to i32
    %c0_i32_1 = arith.constant 0 : i32
    %7 = arith.cmpi ne, %6, %c0_i32_1 : i32
    scf.if %7 {
      %c0 = arith.constant 0 : index
      %c0_3 = arith.constant 0 : index
      %11 = vector.load %arg10[%c0, %c0_3] : memref<64x128xf32, #tpu.memory_space<vmem>>, vector<64x128xf32>
      %c0_4 = arith.constant 0 : index
      %c0_5 = arith.constant 0 : index
      %c0_6 = arith.constant 0 : index
      %12 = vector.load %arg5[%c0_4, %c0_5, %c0_6] : memref<1x64x128xbf16, #tpu.memory_space<vmem>>, vector<1x64x128xbf16>
      %13 = vector.shape_cast %12 : vector<1x64x128xbf16> to vector<64x128xbf16>
      %c0_7 = arith.constant 0 : index
      %c0_8 = arith.constant 0 : index
      %14 = vector.load %arg6[%c0_7, %c0_8] : memref<128x128xbf16, #tpu.memory_space<vmem>>, vector<128x128xbf16>
      %cst = arith.constant dense<0.000000e+00> : vector<64x128xf32>
      %15 = tpu.matmul %13, %14, %cst {dimension_numbers = #tpu.dot_dimension_numbers<[1], [0], [0], [1], [0, 0, 1, 1], [], []>} : vector<64x128xbf16>, vector<128x128xbf16>, vector<64x128xf32> -> vector<64x128xf32>
      %16 = arith.addf %11, %15 : vector<64x128xf32>
      %c0_9 = arith.constant 0 : index
      %c0_10 = arith.constant 0 : index
      %17 = vector.load %arg10[%c0_9, %c0_10] : memref<64x128xf32, #tpu.memory_space<vmem>>, vector<64x128xf32>
      tpu.vector_store %arg10[%c0_9, %c0_10], %16 {strides = array<i32>} : memref<64x128xf32, #tpu.memory_space<vmem>>, vector<64x128xf32>,
    } else {
    }
    %c1_i32 = arith.constant 1 : i32
    %8 = arith.cmpi eq, %arg1, %c1_i32 : i32
    %9 = arith.extui %8 : i1 to i32
    %c0_i32_2 = arith.constant 0 : i32
    %10 = arith.cmpi ne, %9, %c0_i32_2 : i32
    scf.if %10 {
      %c0 = arith.constant 0 : index
      %c0_3 = arith.constant 0 : index
      %11 = vector.load %arg10[%c0, %c0_3] : memref<64x128xf32, #tpu.memory_space<vmem>>, vector<64x128xf32>
      %12 = arith.truncf %11 : vector<64x128xf32> to vector<64x128xbf16>
      %c0_4 = arith.constant 0 : index
      %c0_5 = arith.constant 0 : index
      %13 = vector.load %arg8[%c0_4, %c0_5] : memref<64x128xbf16, #tpu.memory_space<vmem>>, vector<64x128xbf16>
      tpu.vector_store %arg8[%c0_4, %c0_5], %12 {strides = array<i32>} : memref<64x128xbf16, #tpu.memory_space<vmem>>, vector<64x128xbf16>,
      %c0_6 = arith.constant 0 : index
      %c0_7 = arith.constant 0 : index
      %14 = vector.load %arg7[%c0_6, %c0_7] : memref<64x128xf32, #tpu.memory_space<vmem>>, vector<64x128xf32>
      %15 = arith.addf %14, %11 : vector<64x128xf32>
      %cst = arith.constant 1.000000e+00 : f32
      %16 = vector.broadcast %cst : f32 to vector<64x128xf32>
      %17 = arith.mulf %15, %16 : vector<64x128xf32>
      %c0_8 = arith.constant 0 : index
      %c0_9 = arith.constant 0 : index
      %18 = vector.load %arg9[%c0_8, %c0_9] : memref<64x128xf32, #tpu.memory_space<vmem>>, vector<64x128xf32>
      tpu.vector_store %arg9[%c0_8, %c0_9], %17 {strides = array<i32>} : memref<64x128xf32, #tpu.memory_space<vmem>>, vector<64x128xf32>,
    } else {
    }
    return
  }
  func.func @transform_0(%arg0: i32, %arg1: i32, %arg2: memref<4xi32, #tpu.memory_space<smem>>, %arg3: memref<8xi32, #tpu.memory_space<smem>>, %arg4: memref<8xi32, #tpu.memory_space<smem>>) -> (i32, i32, i32) {
    %c2_i32 = arith.constant 2 : i32
    %0 = arith.muli %arg0, %c2_i32 : i32
    %1 = arith.addi %0, %arg1 : i32
    %2 = arith.index_cast %1 : i32 to index
    %3 = memref.load %arg3[%2] : memref<8xi32, #tpu.memory_space<smem>>
    %c0_i32 = arith.constant 0 : i32
    %c0_i32_0 = arith.constant 0 : i32
    %c0_i32_1 = arith.constant 0 : i32
    return %3, %c0_i32, %c0_i32_0 : i32, i32, i32
  }
  func.func @transform_1(%arg0: i32, %arg1: i32, %arg2: memref<4xi32, #tpu.memory_space<smem>>, %arg3: memref<8xi32, #tpu.memory_space<smem>>, %arg4: memref<8xi32, #tpu.memory_space<smem>>) -> (i32, i32) {
    %c2_i32 = arith.constant 2 : i32
    %0 = arith.muli %arg0, %c2_i32 : i32
    %1 = arith.addi %0, %arg1 : i32
    %2 = arith.index_cast %1 : i32 to index
    %3 = memref.load %arg4[%2] : memref<8xi32, #tpu.memory_space<smem>>
    %c0_i32 = arith.constant 0 : i32
    %c0_i32_0 = arith.constant 0 : i32
    return %3, %c0_i32 : i32, i32
  }
  func.func @transform_2(%arg0: i32, %arg1: i32, %arg2: memref<4xi32, #tpu.memory_space<smem>>, %arg3: memref<8xi32, #tpu.memory_space<smem>>, %arg4: memref<8xi32, #tpu.memory_space<smem>>) -> (i32, i32) {
    %c0_i32 = arith.constant 0 : i32
    %c0_i32_0 = arith.constant 0 : i32
    return %arg0, %c0_i32 : i32, i32
  }
  func.func @transform_3(%arg0: i32, %arg1: i32, %arg2: memref<4xi32, #tpu.memory_space<smem>>, %arg3: memref<8xi32, #tpu.memory_space<smem>>, %arg4: memref<8xi32, #tpu.memory_space<smem>>) -> (i32, i32) {
    %c0_i32 = arith.constant 0 : i32
    %c0_i32_0 = arith.constant 0 : i32
    return %arg0, %c0_i32 : i32, i32
  }
  func.func @transform_4(%arg0: i32, %arg1: i32, %arg2: memref<4xi32, #tpu.memory_space<smem>>, %arg3: memref<8xi32, #tpu.memory_space<smem>>, %arg4: memref<8xi32, #tpu.memory_space<smem>>) -> (i32, i32) {
    %c0_i32 = arith.constant 0 : i32
    %c0_i32_0 = arith.constant 0 : i32
    return %arg0, %c0_i32 : i32, i32
  }
}

</mosaic_0001>

<llo_original>
// kernel: tpu_custom_call.1
$region0: #{tpu_custom_call.1}
  #allocation0 [shape = 'u32[]', space=smem, size = 0x4, offset = 0x4, fixed_abs, tag = 'smem constant byte address 0x4 - core index']
  #allocation1 [shape = 'u32[144,128]{1,0:T(1,128)}', space=vmem, size = 0x12000, scoped, tag = 'internal scratch']
  #allocation2 [shape = 'f32[64,128]{1,0:T(8,128)}', space=vmem, size = 0x8000, scoped, tag = 'scratch operand']
  #allocation3 [shape = 's32[1]{0}', space=sflag, size = 0x4, scoped, tag = 'scoped memory for tpu_custom_call.1']
  #allocation4 [shape = 'u8[512]{0}', space=smem, size = 0x200, scoped, tag = 'prefetched SMEM operand 0']
  #allocation5 [shape = 'u8[512]{0}', space=smem, size = 0x200, scoped, tag = 'prefetched SMEM operand 1']
  #allocation6 [shape = 'u8[512]{0}', space=smem, size = 0x200, scoped, tag = 'prefetched SMEM operand 2']
  %s0 = inlined_call_operand.hbm [shape: s32[4], index: 0, kind: input, shape index: {}]
  %s1 = inlined_call_operand.vmem [shape: s32[8], index: 1, kind: input, shape index: {}]
  %s2 = inlined_call_operand.vmem [shape: s32[8], index: 2, kind: input, shape index: {}]
  %s3 = inlined_call_operand.hbm [shape: bf16[5,64,128], index: 3, kind: input, shape index: {}]
  %s4 = inlined_call_operand.hbm [shape: bf16[256,128], index: 4, kind: input, shape index: {}]
  %s5 = inlined_call_operand.hbm [shape: f32[256,128], index: 5, kind: input, shape index: {}]
  %s6 = inlined_call_operand.hbm [shape: bf16[256,128], index: 6, kind: output, shape index: {0}]
  %s7 = inlined_call_operand.hbm [shape: f32[256,128], index: 7, kind: output, shape index: {1}]
  %8 = xla_tuple %s6, %s7
  %s9 = sld [smem:[#allocation0]]
  $region77: #{tpu_custom_call.1} parent=0
    _
  %s11 = ssub.s32 1, %s9
  %s12 = scalar_select 0, %s11, %s9
  %14 = dma.hbm_to_smem %s0, 16, [#allocation4], [#allocation3]
  %s15 = sshll.u32 %s1, 4
  %s16 = int_to_ptr.vmem [resolvable:$true] %s15
  %18 = dma.vmem_to_smem %s16, 16, [#allocation5], [#allocation3]
  %s19 = sshll.u32 %s2, 4
  %s20 = int_to_ptr.vmem [resolvable:$true] %s19
  %22 = dma.vmem_to_smem %s20, 16, [#allocation6], [#allocation3]
  %23 = dma.done [#allocation3], 48
  %24 = sfence
  $region1: #{tpu_custom_call.1} parent=0
    #allocation7 [shape = 'u8[32768]{0}', space=vmem, size = 0x8000, scoped, tag = 'input window, operand 3']
    #allocation8 [shape = 's32[2]{0}', space=sflag, size = 0x8, scoped, tag = 'scoped memory for tpu_custom_call.1']
    #allocation9 [shape = 's32[2]{0}', space=sflag, size = 0x8, scoped, tag = 'scoped memory for tpu_custom_call.1']
    #allocation10 [shape = 'u8[65536]{0}', space=vmem, size = 0x10000, scoped, tag = 'input window, operand 4']
    #allocation11 [shape = 's32[2]{0}', space=sflag, size = 0x8, scoped, tag = 'scoped memory for tpu_custom_call.1']
    #allocation12 [shape = 'u8[65536]{0}', space=vmem, size = 0x10000, scoped, tag = 'input window, operand 5']
    #allocation13 [shape = 'u8[32768]{0}', space=vmem, size = 0x8000, scoped, tag = 'output window, operand 0']
    #allocation14 [shape = 'u8[65536]{0}', space=vmem, size = 0x10000, scoped, tag = 'output window, operand 1']
    #allocation15 [shape = 's32[2]{0}', space=sflag, size = 0x8, scoped, tag = 'scoped memory for tpu_custom_call.1']
    %25 = vsyncpa [#allocation8], 0
    %s26 = scalar_lea.sflag [#allocation8], 1
    %27 = vsyncpa %s26, 0
    %28 = vsyncpa [#allocation11], 0
    %s29 = scalar_lea.sflag [#allocation11], 1
    %30 = vsyncpa %s29, 0
    %31 = vsyncpa [#allocation9], 0
    %s32 = scalar_lea.sflag [#allocation9], 1
    %33 = vsyncpa %s32, 0
    %34 = vsyncpa [#allocation15], 0
    %s35 = scalar_lea.sflag [#allocation15], 1
    %36 = vsyncpa %s35, 0
    loop: start=0, step=1, limit=10
    $region2: #{tpu_custom_call.1} parent=1 // loop_pre_header
      _
    $region3: #{tpu_custom_call.1} parent=1 // loop_header
      %s38 = sphi 0, %s42
      %p39 = scmp.ge.s32.totalorder %s38, 10
      %s45 = sphi 0, %s57
      %s46 = sphi 0, %s53
      %s47 = sphi 0, %s45
      %s48 = sphi 0, %s46
      %s49 = sphi 0, %s47
      %s50 = sphi 0, %s48
      %s66 = sphi 0, %s68
      %s69 = sphi 0, %s66
      %s70 = sphi 0, %s69
      %s86 = sphi 0, %s70
      %s98 = sphi 0, %s100
      %s101 = sphi 0, %s98
      %s102 = sphi 0, %s101
      %s118 = sphi 0, %s102
      %s124 = sphi 0, %s126
      %s127 = sphi 0, %s124
      %s128 = sphi 0, %s127
      %s144 = sphi 0, %s128
      %s150 = sphi 0, %s152
      %s153 = sphi 0, %s150
      %s154 = sphi 0, %s153
      %s170 = sphi 0, %s154
      %s176 = sphi 0, %s178
      %s179 = sphi 0, %s176
      %s180 = sphi 0, %s179
      %s196 = sphi 0, %s180
    $region4: #{tpu_custom_call.1} parent=1 // loop_header_branch
      %41 = sbr.rel (%p39) target = $region8
    $region5: #{tpu_custom_call.1} parent=1 // loop_body
      %s43 = ssub.s32 %s38, 1
      %s44 = ssub.s32 %s38, 2
      %s51 = sadd.s32 1, %s46
      %p52 = scmp.ge.s32.totalorder %s51, 2
      %s53 = scalar_select %p52, 0, %s51
      %s54 = sadd.s32 1, %s45
      %s55 = scalar_select %p52, %s54, %s45
      %p56 = scmp.ge.s32.totalorder %s55, 4
      %s57 = scalar_select %p56, 0, %s55
      %s58 = smul.u32 %s45, 2
      %s59 = sadd.s32 %s58, %s46
      %s60 = sld [smem:[#allocation5 + %s59]]
      %s61 = smul.u32 %s57, 2
      %s62 = sadd.s32 %s61, %s53
      %s63 = sld [smem:[#allocation5 + %s62]]
      %s64 = ssub.s32 %s60, %s63
      %p65 = scmp.eq.s32.totalorder %s64, 0
      %s67 = sadd.s32 %s66, 1
      %s68 = scalar_select %p65, %s66, %s67
      %p71 = pneg %p65
      %p72 = scmp.eq.s32.totalorder %s38, 7
      %p73 = por %p71, %p72
      %p74 = scmp.ne.s32.totalorder %s66, %s69
      %p75 = scmp.eq.s32.totalorder %s38, 0
      %p76 = por %p74, %p75
      %p77 = scmp.ne.s32.totalorder %s66, %s69
      %p78 = scmp.eq.s32.totalorder %s43, 7
      %p79 = por %p77, %p78
      %p80 = scmp.ne.s32.totalorder %s69, %s70
      %p81 = scmp.eq.s32.totalorder %s43, 0
      %p82 = por %p80, %p81
      %p83 = scmp.ne.s32.totalorder %s69, %s70
      %p84 = scmp.eq.s32.totalorder %s44, 7
      %p85 = por %p83, %p84
      %p87 = scmp.ne.s32.totalorder %s70, %s86
      %p88 = scmp.eq.s32.totalorder %s44, 0
      %p89 = por %p87, %p88
      %s90 = smul.u32 %s45, 2
      %s91 = sadd.s32 %s90, %s46
      %s92 = sld [smem:[#allocation6 + %s91]]
      %s93 = smul.u32 %s57, 2
      %s94 = sadd.s32 %s93, %s53
      %s95 = sld [smem:[#allocation6 + %s94]]
      %s96 = ssub.s32 %s92, %s95
      %p97 = scmp.eq.s32.totalorder %s96, 0
      %s99 = sadd.s32 %s98, 1
      %s100 = scalar_select %p97, %s98, %s99
      %p103 = pneg %p97
      %p104 = scmp.eq.s32.totalorder %s38, 7
      %p105 = por %p103, %p104
      %p106 = scmp.ne.s32.totalorder %s98, %s101
      %p107 = scmp.eq.s32.totalorder %s38, 0
      %p108 = por %p106, %p107
      %p109 = scmp.ne.s32.totalorder %s98, %s101
      %p110 = scmp.eq.s32.totalorder %s43, 7
      %p111 = por %p109, %p110
      %p112 = scmp.ne.s32.totalorder %s101, %s102
      %p113 = scmp.eq.s32.totalorder %s43, 0
      %p114 = por %p112, %p113
      %p115 = scmp.ne.s32.totalorder %s101, %s102
      %p116 = scmp.eq.s32.totalorder %s44, 7
      %p117 = por %p115, %p116
      %p119 = scmp.ne.s32.totalorder %s102, %s118
      %p120 = scmp.eq.s32.totalorder %s44, 0
      %p121 = por %p119, %p120
      %s122 = ssub.s32 %s45, %s57
      %p123 = scmp.eq.s32.totalorder %s122, 0
      %s125 = sadd.s32 %s124, 1
      %s126 = scalar_select %p123, %s124, %s125
      %p129 = pneg %p123
      %p130 = scmp.eq.s32.totalorder %s38, 7
      %p131 = por %p129, %p130
      %p132 = scmp.ne.s32.totalorder %s124, %s127
      %p133 = scmp.eq.s32.totalorder %s38, 0
      %p134 = por %p132, %p133
      %p135 = scmp.ne.s32.totalorder %s124, %s127
      %p136 = scmp.eq.s32.totalorder %s43, 7
      %p137 = por %p135, %p136
      %p138 = scmp.ne.s32.totalorder %s127, %s128
      %p139 = scmp.eq.s32.totalorder %s43, 0
      %p140 = por %p138, %p139
      %p141 = scmp.ne.s32.totalorder %s127, %s128
      %p142 = scmp.eq.s32.totalorder %s44, 7
      %p143 = por %p141, %p142
      %p145 = scmp.ne.s32.totalorder %s128, %s144
      %p146 = scmp.eq.s32.totalorder %s44, 0
      %p147 = por %p145, %p146
      %s148 = ssub.s32 %s45, %s57
      %p149 = scmp.eq.s32.totalorder %s148, 0
      %s151 = sadd.s32 %s150, 1
      %s152 = scalar_select %p149, %s150, %s151
      %p155 = pneg %p149
      %p156 = scmp.eq.s32.totalorder %s38, 7
      %p157 = por %p155, %p156
      %p158 = scmp.ne.s32.totalorder %s150, %s153
      %p159 = scmp.eq.s32.totalorder %s38, 0
      %p160 = por %p158, %p159
      %p161 = scmp.ne.s32.totalorder %s150, %s153
      %p162 = scmp.eq.s32.totalorder %s43, 7
      %p163 = por %p161, %p162
      %p164 = scmp.ne.s32.totalorder %s153, %s154
      %p165 = scmp.eq.s32.totalorder %s43, 0
      %p166 = por %p164, %p165
      %p167 = scmp.ne.s32.totalorder %s153, %s154
      %p168 = scmp.eq.s32.totalorder %s44, 7
      %p169 = por %p167, %p168
      %p171 = scmp.ne.s32.totalorder %s154, %s170
      %p172 = scmp.eq.s32.totalorder %s44, 0
      %p173 = por %p171, %p172
      %s174 = ssub.s32 %s45, %s57
      %p175 = scmp.eq.s32.totalorder %s174, 0
      %s177 = sadd.s32 %s176, 1
      %s178 = scalar_select %p175, %s176, %s177
      %p181 = pneg %p175
      %p182 = scmp.eq.s32.totalorder %s38, 7
      %p183 = por %p181, %p182
      %p184 = scmp.ne.s32.totalorder %s176, %s179
      %p185 = scmp.eq.s32.totalorder %s38, 0
      %p186 = por %p184, %p185
      %p187 = scmp.ne.s32.totalorder %s176, %s179
      %p188 = scmp.eq.s32.totalorder %s43, 7
      %p189 = por %p187, %p188
      %p190 = scmp.ne.s32.totalorder %s179, %s180
      %p191 = scmp.eq.s32.totalorder %s43, 0
      %p192 = por %p190, %p191
      %p193 = scmp.ne.s32.totalorder %s179, %s180
      %p194 = scmp.eq.s32.totalorder %s44, 7
      %p195 = por %p193, %p194
      %p197 = scmp.ne.s32.totalorder %s180, %s196
      %p198 = scmp.eq.s32.totalorder %s44, 0
      %p199 = por %p197, %p198
      %p200 = scmp.le.s32.totalorder 1, %s38
      %p201 = scmp.lt.s32.totalorder %s38, 9
      %p202 = pnand %p200, %p201
      %p203 = pneg %p202
      // Predicated region
      $region9: #{tpu_custom_call.1} parent=5 // pred_check
        _
      $region10: #{tpu_custom_call.1} parent=5 // pred_check_branch
        %205 = sbr.rel (%p202) target = $region12
      $region11: #{tpu_custom_call.1} parent=5 // pred_region
        %s206 = ssub.s32 %s38, 1
      $region12: #{tpu_custom_call.1} parent=5 // pred_fallthru
        _
      %p207 = scmp.lt.s32.totalorder %s38, 8
      // Predicated region
      $region13: #{tpu_custom_call.1} parent=5 // pred_check
        %p208 = pneg %p207
      $region14: #{tpu_custom_call.1} parent=5 // pred_check_branch
        %210 = sbr.rel (%p208) target = $region16
      $region15: #{tpu_custom_call.1} parent=5 // pred_region
        // Predicated region
        $region17: #{tpu_custom_call.1} parent=15 // pred_check
          %p211 = pneg %p76
        $region18: #{tpu_custom_call.1} parent=15 // pred_check_branch
          %213 = sbr.rel (%p211) target = $region20
        $region19: #{tpu_custom_call.1} parent=15 // pred_region
          %s214 = sand.u32 %s66, 1
          %s215 = scalar_lea.sflag [#allocation8], %s214
          %s216 = sand.u32 %s66, 1
          %s217 = smul.addr %s216, 32
          %s218 = scalar_lea.vmem [#allocation7], %s217
          %s219 = smul.u32 %s45, 2
          %s220 = sadd.s32 %s219, %s46
          %s221 = sld [smem:[#allocation5 + %s220]]
          %s223 = ssub.s32 512, 512
          %224 = vsyncadd %s215, %s223
          %s225 = smul.addr %s221, 8
          %s226 = smul.addr %s225, 64
          %s227 = scalar_lea.hbm %s3, %s226
          %s228 = sshll.u32 %s218, 4
          %s229 = int_to_ptr.vmem [resolvable:$true] %s228
          %234 = dma.hbm_to_vmem [thread:$0]  %s227, 512, %s229, %s215, 64, 64, 4
        $region20: #{tpu_custom_call.1} parent=15 // pred_fallthru
          _
        // Predicated region
        $region21: #{tpu_custom_call.1} parent=15 // pred_check
          %p235 = pneg %p108
        $region22: #{tpu_custom_call.1} parent=15 // pred_check_branch
          %237 = sbr.rel (%p235) target = $region24
        $region23: #{tpu_custom_call.1} parent=15 // pred_region
          %s238 = sand.u32 %s38, 1
          %s239 = scalar_lea.sflag [#allocation11], %s238
          %s240 = sand.u32 %s98, 1
          %s241 = smul.addr %s240, 64
          %s242 = scalar_lea.vmem [#allocation10], %s241
          %s243 = smul.u32 %s45, 2
          %s244 = sadd.s32 %s243, %s46
          %s245 = sld [smem:[#allocation6 + %s244]]
          %s246 = smul.u32 16, %s245
          %s248 = ssub.s32 1024, 1024
          %249 = vsyncadd %s239, %s248
          %s250 = smul.addr %s246, 64
          %s251 = scalar_lea.hbm %s4, %s250
          %s252 = sshll.u32 %s242, 4
          %s253 = int_to_ptr.vmem [resolvable:$true] %s252
          %258 = dma.hbm_to_vmem [thread:$0]  %s251, 1024, %s253, %s239, 64, 64, 4
        $region24: #{tpu_custom_call.1} parent=15 // pred_fallthru
          _
        // Predicated region
        $region25: #{tpu_custom_call.1} parent=15 // pred_check
          %p259 = pneg %p134
        $region26: #{tpu_custom_call.1} parent=15 // pred_check_branch
          %261 = sbr.rel (%p259) target = $region28
        $region27: #{tpu_custom_call.1} parent=15 // pred_region
          %s262 = sand.u32 %s38, 1
          %s263 = scalar_lea.sflag [#allocation11], %s262
          %s264 = sand.u32 %s124, 1
          %s265 = smul.addr %s264, 64
          %s266 = scalar_lea.vmem [#allocation12], %s265
          %s267 = smul.u32 8, %s45
          %s269 = ssub.s32 1024, 1024
          %270 = vsyncadd %s263, %s269
          %s271 = smul.addr %s267, 128
          %s272 = scalar_lea.hbm %s5, %s271
          %s273 = sshll.u32 %s266, 4
          %s274 = int_to_ptr.vmem [resolvable:$true] %s273
          %279 = dma.hbm_to_vmem [thread:$0]  %s272, 1024, %s274, %s263, 128, 128, 8
        $region28: #{tpu_custom_call.1} parent=15 // pred_fallthru
          _
      $region16: #{tpu_custom_call.1} parent=5 // pred_fallthru
        _
      %p280 = scmp.le.s32.totalorder 1, %s38
      %p281 = scmp.lt.s32.totalorder %s38, 9
      %p282 = pnand %p280, %p281
      %p283 = pneg %p282
      // Predicated region
      $region29: #{tpu_custom_call.1} parent=5 // pred_check
        _
      $region30: #{tpu_custom_call.1} parent=5 // pred_check_branch
        %285 = sbr.rel (%p282) target = $region32
      $region31: #{tpu_custom_call.1} parent=5 // pred_region
        %s286 = ssub.s32 %s38, 1
        %s287 = sand.u32 %s69, 1
        %s288 = scalar_lea.sflag [#allocation8], %s287
        %s289 = sand.u32 %s69, 1
        %s290 = smul.addr %s289, 32
        %s291 = scalar_lea.vmem [#allocation7], %s290
        // Predicated region
        $region33: #{tpu_custom_call.1} parent=31 // pred_check
          %p292 = pneg %p82
        $region34: #{tpu_custom_call.1} parent=31 // pred_check_branch
          %294 = sbr.rel (%p292) target = $region36
        $region35: #{tpu_custom_call.1} parent=31 // pred_region
          %295 = dma.done %s288, 512
        $region36: #{tpu_custom_call.1} parent=31 // pred_fallthru
          _
        %s296 = sand.u32 %s43, 1
        %s297 = scalar_lea.sflag [#allocation11], %s296
        %s298 = sand.u32 %s101, 1
        %s299 = smul.addr %s298, 64
        %s300 = scalar_lea.vmem [#allocation10], %s299
        // Predicated region
        $region37: #{tpu_custom_call.1} parent=31 // pred_check
          %p301 = pneg %p114
        $region38: #{tpu_custom_call.1} parent=31 // pred_check_branch
          %303 = sbr.rel (%p301) target = $region40
        $region39: #{tpu_custom_call.1} parent=31 // pred_region
          %304 = dma.done %s297, 1024
        $region40: #{tpu_custom_call.1} parent=31 // pred_fallthru
          _
        %s305 = sand.u32 %s43, 1
        %s306 = scalar_lea.sflag [#allocation11], %s305
        %s307 = sand.u32 %s127, 1
        %s308 = smul.addr %s307, 64
        %s309 = scalar_lea.vmem [#allocation12], %s308
        // Predicated region
        $region41: #{tpu_custom_call.1} parent=31 // pred_check
          %p310 = pneg %p140
        $region42: #{tpu_custom_call.1} parent=31 // pred_check_branch
          %312 = sbr.rel (%p310) target = $region44
        $region43: #{tpu_custom_call.1} parent=31 // pred_region
          %313 = dma.done %s306, 1024
        $region44: #{tpu_custom_call.1} parent=31 // pred_fallthru
          _
        %s314 = sand.u32 %s69, 1
        %s315 = scalar_lea.sflag [#allocation8], %s314
        %s316 = sand.u32 %s69, 1
        %s317 = smul.addr %s316, 32
        %s318 = scalar_lea.vmem [#allocation7], %s317
        %p319 = pneg %p82
        %p320 = pneg %p79
        %s321 = sand.u32 %s43, 1
        %s322 = scalar_lea.sflag [#allocation11], %s321
        %s323 = sand.u32 %s101, 1
        %s324 = smul.addr %s323, 64
        %s325 = scalar_lea.vmem [#allocation10], %s324
        %p326 = pneg %p114
        %p327 = pneg %p111
        %s328 = sand.u32 %s43, 1
        %s329 = scalar_lea.sflag [#allocation11], %s328
        %s330 = sand.u32 %s127, 1
        %s331 = smul.addr %s330, 64
        %s332 = scalar_lea.vmem [#allocation12], %s331
        %p333 = pneg %p140
        %p334 = pneg %p137
        %p335 = pneg %p166
        %p336 = pneg %p163
        %s337 = sand.u32 %s153, 1
        %s338 = scalar_lea.sflag [#allocation9], %s337
        %s339 = sand.u32 %s153, 1
        %s340 = smul.addr %s339, 32
        %s341 = scalar_lea.vmem [#allocation13], %s340
        %p342 = pneg %p192
        %p343 = pneg %p189
        %s344 = sand.u32 %s179, 1
        %s345 = scalar_lea.sflag [#allocation15], %s344
        %s346 = sand.u32 %s179, 1
        %s347 = smul.addr %s346, 64
        %s348 = scalar_lea.vmem [#allocation14], %s347
        %s349 = smul.u32 %s47, 2
        %s350 = sadd.s32 %s349, %s48
        %s351 = sld [smem:[#allocation5 + %s350]]
        %s352 = smul.u32 %s47, 2
        %s353 = sadd.s32 %s352, %s48
        %s354 = sld [smem:[#allocation6 + %s353]]
        %s355 = smul.u32 16, %s354
        %s356 = smul.u32 8, %s47
        %s357 = smul.u32 8, %s47
        %s358 = smul.u32 8, %s47
        %p360 = scmp.eq.s32.totalorder %s48, 0
        // Predicated region
        $region45: #{tpu_custom_call.1} parent=31 // pred_check
          %p361 = pneg %p360
        $region46: #{tpu_custom_call.1} parent=31 // pred_check_branch
          %363 = sbr.rel (%p361) target = $region48
        $region47: #{tpu_custom_call.1} parent=31 // pred_region
          %364 = vst [vmem:[#allocation2] sm:$0xff] 0.0
          %365 = vst [vmem:[#allocation2 + $0x8] sm:$0xff] 0.0
          %366 = vst [vmem:[#allocation2 + $0x10] sm:$0xff] 0.0
          %367 = vst [vmem:[#allocation2 + $0x18] sm:$0xff] 0.0
          %368 = vst [vmem:[#allocation2 + $0x20] sm:$0xff] 0.0
          %369 = vst [vmem:[#allocation2 + $0x28] sm:$0xff] 0.0
          %370 = vst [vmem:[#allocation2 + $0x30] sm:$0xff] 0.0
          %371 = vst [vmem:[#allocation2 + $0x38] sm:$0xff] 0.0
        $region48: #{tpu_custom_call.1} parent=31 // pred_fallthru
          _
        %s372 = sld [smem:[#allocation4 + %s47]]
        %p373 = scmp.lt.s32.totalorder %s48, %s372
        // Predicated region
        $region49: #{tpu_custom_call.1} parent=31 // pred_check
          %p374 = pneg %p373
        $region50: #{tpu_custom_call.1} parent=31 // pred_check_branch
          %376 = sbr.rel (%p374) target = $region52
        $region51: #{tpu_custom_call.1} parent=31 // pred_region
          %v377 = vld [vmem:[#allocation2] sm:$0xff]
          %v378 = vld [vmem:[#allocation2 + $0x8] sm:$0xff]
          %v379 = vld [vmem:[#allocation2 + $0x10] sm:$0xff]
          %v380 = vld [vmem:[#allocation2 + $0x18] sm:$0xff]
          %v381 = vld [vmem:[#allocation2 + $0x20] sm:$0xff]
          %v382 = vld [vmem:[#allocation2 + $0x28] sm:$0xff]
          %v383 = vld [vmem:[#allocation2 + $0x30] sm:$0xff]
          %v384 = vld [vmem:[#allocation2 + $0x38] sm:$0xff]
          %v385 = vld [vmem:[%s291] sm:$0xf]
          %v386 = vld [vmem:[%s291 + $0x4] sm:$0xf]
          %v387 = vld [vmem:[%s291 + $0x8] sm:$0xf]
          %v388 = vld [vmem:[%s291 + $0xc] sm:$0xf]
          %v389 = vld [vmem:[%s291 + $0x10] sm:$0xf]
          %v390 = vld [vmem:[%s291 + $0x14] sm:$0xf]
          %v391 = vld [vmem:[%s291 + $0x18] sm:$0xf]
          %v392 = vld [vmem:[%s291 + $0x1c] sm:$0xf]
          %v393 = vld [vmem:[%s300] sm:$0xf]
          %v394 = vld [vmem:[%s300 + $0x4] sm:$0xf]
          %v395 = vld [vmem:[%s300 + $0x8] sm:$0xf]
          %v396 = vld [vmem:[%s300 + $0xc] sm:$0xf]
          %v397 = vld [vmem:[%s300 + $0x10] sm:$0xf]
          %v398 = vld [vmem:[%s300 + $0x14] sm:$0xf]
          %v399 = vld [vmem:[%s300 + $0x18] sm:$0xf]
          %v400 = vld [vmem:[%s300 + $0x1c] sm:$0xf]
          %v401 = vld [vmem:[%s300 + $0x20] sm:$0xf]
          %v402 = vld [vmem:[%s300 + $0x24] sm:$0xf]
          %v403 = vld [vmem:[%s300 + $0x28] sm:$0xf]
          %v404 = vld [vmem:[%s300 + $0x2c] sm:$0xf]
          %v405 = vld [vmem:[%s300 + $0x30] sm:$0xf]
          %v406 = vld [vmem:[%s300 + $0x34] sm:$0xf]
          %v407 = vld [vmem:[%s300 + $0x38] sm:$0xf]
          %v408 = vld [vmem:[%s300 + $0x3c] sm:$0xf]
          %v417 = vunpack.c.l.b16 %v385
          %v418 = vunpack.c.l.b16 %v386
          %v419 = vunpack.c.l.b16 %v387
          %v420 = vunpack.c.l.b16 %v388
          %v421 = vunpack.c.l.b16 %v389
          %v422 = vunpack.c.l.b16 %v390
          %v423 = vunpack.c.l.b16 %v391
          %v424 = vunpack.c.l.b16 %v392
          %v425 = vpack.c.b16 %v418, %v417
          %v426 = vpack.c.b16 %v420, %v419
          %v427 = vpack.c.b16 %v422, %v421
          %v428 = vpack.c.b16 %v424, %v423
          %v449 = vunpack.c.l.b16 %v393
          %v450 = vunpack.c.l.b16 %v394
          %v451 = vunpack.c.l.b16 %v395
          %v452 = vunpack.c.l.b16 %v396
          %v453 = vunpack.c.l.b16 %v397
          %v454 = vunpack.c.l.b16 %v398
          %v455 = vunpack.c.l.b16 %v399
          %v456 = vunpack.c.l.b16 %v400
          %v457 = vunpack.c.l.b16 %v401
          %v458 = vunpack.c.l.b16 %v402
          %v459 = vunpack.c.l.b16 %v403
          %v460 = vunpack.c.l.b16 %v404
          %v461 = vunpack.c.l.b16 %v405
          %v462 = vunpack.c.l.b16 %v406
          %v463 = vunpack.c.l.b16 %v407
          %v464 = vunpack.c.l.b16 %v408
          %v465 = vpack.c.b16 %v450, %v449
          %v466 = vpack.c.b16 %v452, %v451
          %v467 = vpack.c.b16 %v454, %v453
          %v468 = vpack.c.b16 %v456, %v455
          %v469 = vpack.c.b16 %v458, %v457
          %v470 = vpack.c.b16 %v460, %v459
          %v471 = vpack.c.b16 %v462, %v461
          %v472 = vpack.c.b16 %v464, %v463
          %481 = vmatprep.subr.bf16.mxu0 0
          %482 = vmatpush1.bf16.msra.mxu0 %v465
          %483 = vmatprep.subr.bf16.mxu0 0
          %484 = vmatpush1.bf16.msra.mxu0 %v466
          %485 = vmatprep.subr.bf16.mxu0 0
          %486 = vmatpush1.bf16.msra.mxu0 %v467
          %487 = vmatprep.subr.bf16.mxu0 0
          %488 = vmatpush1.bf16.msra.mxu0 %v468
          %489 = vmatprep.subr.bf16.mxu0 0
          %490 = vmatpush1.bf16.msra.mxu0 %v469
          %491 = vmatprep.subr.bf16.mxu0 0
          %492 = vmatpush1.bf16.msra.mxu0 %v470
          %493 = vmatprep.subr.bf16.mxu0 0
          %494 = vmatpush1.bf16.msra.mxu0 %v471
          %495 = vmatprep.subr.bf16.mxu0 0
          %496 = vmatpush1.bf16.msra.mxu0 %v472
          %497 = vmatprep.subr.bf16.mxu0 0
          %498 = vmatpush1.bf16.msra.mxu0 0
          %499 = vmatprep.subr.bf16.mxu0 0
          %500 = vmatpush1.bf16.msra.mxu0 0
          %501 = vmatprep.subr.bf16.mxu0 0
          %502 = vmatpush1.bf16.msra.mxu0 0
          %503 = vmatprep.subr.bf16.mxu0 0
          %504 = vmatpush1.bf16.msra.mxu0 0
          %505 = vmatprep.subr.bf16.mxu0 0
          %506 = vmatpush1.bf16.msra.mxu0 0
          %507 = vmatprep.subr.bf16.mxu0 0
          %508 = vmatpush1.bf16.msra.mxu0 0
          %509 = vmatprep.subr.bf16.mxu0 0
          %510 = vmatpush1.bf16.msra.mxu0 0
          %511 = vmatprep.subr.bf16.mxu0 0
          %512 = vmatpush1.bf16.msra.mxu0 0
          %513 = vmatprep.mubr.bf16.mxu0 0
          %514 = vmatmul.mubr.bf16.gmra.mrb[0].mxu0 %v425
          %v515 = vpop.f32.mrb[0].mxu0
          %v516 = vadd.f32 0.0, %v515
          %v517 = vpop.f32.mrb[0].mxu0
          %v518 = vpop.f32.mrb[0].mxu0
          %v519 = vadd.f32 0.0, %v518
          %v520 = vpop.f32.mrb[0].mxu0
          %521 = vmatprep.mubr.bf16.mxu0 0
          %522 = vmatmul.mubr.bf16.gmra.mrb[0].mxu0 %v426
          %v523 = vpop.f32.mrb[0].mxu0
          %v524 = vadd.f32 0.0, %v523
          %v525 = vpop.f32.mrb[0].mxu0
          %v526 = vpop.f32.mrb[0].mxu0
          %v527 = vadd.f32 0.0, %v526
          %v528 = vpop.f32.mrb[0].mxu0
          %529 = vmatprep.mubr.bf16.mxu0 0
          %530 = vmatmul.mubr.bf16.gmra.mrb[0].mxu0 %v427
          %v531 = vpop.f32.mrb[0].mxu0
          %v532 = vadd.f32 0.0, %v531
          %v533 = vpop.f32.mrb[0].mxu0
          %v534 = vpop.f32.mrb[0].mxu0
          %v535 = vadd.f32 0.0, %v534
          %v536 = vpop.f32.mrb[0].mxu0
          %537 = vmatprep.mubr.bf16.mxu0 0
          %538 = vmatmul.mubr.bf16.gmra.mrb[0].mxu0 %v428
          %v539 = vpop.f32.mrb[0].mxu0
          %v540 = vadd.f32 0.0, %v539
          %v541 = vpop.f32.mrb[0].mxu0
          %v542 = vpop.f32.mrb[0].mxu0
          %v543 = vadd.f32 0.0, %v542
          %v544 = vpop.f32.mrb[0].mxu0
          %545 = vdwg.mxu0
          %v546 = vadd.f32 %v377, %v516
          %v547 = vadd.f32 %v378, %v519
          %v548 = vadd.f32 %v379, %v524
          %v549 = vadd.f32 %v380, %v527
          %v550 = vadd.f32 %v381, %v532
          %v551 = vadd.f32 %v382, %v535
          %v552 = vadd.f32 %v383, %v540
          %v553 = vadd.f32 %v384, %v543
          %554 = vst [vmem:[#allocation2] sm:$0xff] %v546
          %555 = vst [vmem:[#allocation2 + $0x8] sm:$0xff] %v547
          %556 = vst [vmem:[#allocation2 + $0x10] sm:$0xff] %v548
          %557 = vst [vmem:[#allocation2 + $0x18] sm:$0xff] %v549
          %558 = vst [vmem:[#allocation2 + $0x20] sm:$0xff] %v550
          %559 = vst [vmem:[#allocation2 + $0x28] sm:$0xff] %v551
          %560 = vst [vmem:[#allocation2 + $0x30] sm:$0xff] %v552
          %561 = vst [vmem:[#allocation2 + $0x38] sm:$0xff] %v553
        $region52: #{tpu_custom_call.1} parent=31 // pred_fallthru
          _
        %p562 = scmp.eq.s32.totalorder %s48, 1
        // Predicated region
        $region53: #{tpu_custom_call.1} parent=31 // pred_check
          %p563 = pneg %p562
        $region54: #{tpu_custom_call.1} parent=31 // pred_check_branch
          %565 = sbr.rel (%p563) target = $region56
        $region55: #{tpu_custom_call.1} parent=31 // pred_region
          %v566 = vld [vmem:[#allocation2] sm:$0xff]
          %v567 = vld [vmem:[#allocation2 + $0x8] sm:$0xff]
          %v568 = vld [vmem:[#allocation2 + $0x10] sm:$0xff]
          %v569 = vld [vmem:[#allocation2 + $0x18] sm:$0xff]
          %v570 = vld [vmem:[#allocation2 + $0x20] sm:$0xff]
          %v571 = vld [vmem:[#allocation2 + $0x28] sm:$0xff]
          %v572 = vld [vmem:[#allocation2 + $0x30] sm:$0xff]
          %v573 = vld [vmem:[#allocation2 + $0x38] sm:$0xff]
          %v574 = vpack.c.bf16 %v567, %v566
          %v575 = vpack.c.bf16 %v569, %v568
          %v576 = vpack.c.bf16 %v571, %v570
          %v577 = vpack.c.bf16 %v573, %v572
          %v582 = vunpack.c.l.b16 %v574
          %v583 = vunpack.c.h.b16 %v574
          %v584 = vunpack.c.l.b16 %v575
          %v585 = vunpack.c.h.b16 %v575
          %v586 = vunpack.c.l.b16 %v576
          %v587 = vunpack.c.h.b16 %v576
          %v588 = vunpack.c.l.b16 %v577
          %v589 = vunpack.c.h.b16 %v577
          %v590 = vpack.c.b16 %v582, %v582
          %v591 = vpack.c.b16 %v583, %v583
          %v592 = vpack.c.b16 %v584, %v584
          %v593 = vpack.c.b16 %v585, %v585
          %v594 = vpack.c.b16 %v586, %v586
          %v595 = vpack.c.b16 %v587, %v587
          %v596 = vpack.c.b16 %v588, %v588
          %v597 = vpack.c.b16 %v589, %v589
          %606 = vst [vmem:[%s341] sm:$0xf] %v590
          %607 = vst [vmem:[%s341 + $0x4] sm:$0xf] %v591
          %608 = vst [vmem:[%s341 + $0x8] sm:$0xf] %v592
          %609 = vst [vmem:[%s341 + $0xc] sm:$0xf] %v593
          %610 = vst [vmem:[%s341 + $0x10] sm:$0xf] %v594
          %611 = vst [vmem:[%s341 + $0x14] sm:$0xf] %v595
          %612 = vst [vmem:[%s341 + $0x18] sm:$0xf] %v596
          %613 = vst [vmem:[%s341 + $0x1c] sm:$0xf] %v597
          %v614 = vld [vmem:[%s309] sm:$0xff]
          %v615 = vld [vmem:[%s309 + $0x8] sm:$0xff]
          %v616 = vld [vmem:[%s309 + $0x10] sm:$0xff]
          %v617 = vld [vmem:[%s309 + $0x18] sm:$0xff]
          %v618 = vld [vmem:[%s309 + $0x20] sm:$0xff]
          %v619 = vld [vmem:[%s309 + $0x28] sm:$0xff]
          %v620 = vld [vmem:[%s309 + $0x30] sm:$0xff]
          %v621 = vld [vmem:[%s309 + $0x38] sm:$0xff]
          %v622 = vadd.f32 %v614, %v566
          %v623 = vadd.f32 %v615, %v567
          %v624 = vadd.f32 %v616, %v568
          %v625 = vadd.f32 %v617, %v569
          %v626 = vadd.f32 %v618, %v570
          %v627 = vadd.f32 %v619, %v571
          %v628 = vadd.f32 %v620, %v572
          %v629 = vadd.f32 %v621, %v573
          %630 = vst [vmem:[%s348] sm:$0xff] %v622
          %631 = vst [vmem:[%s348 + $0x8] sm:$0xff] %v623
          %632 = vst [vmem:[%s348 + $0x10] sm:$0xff] %v624
          %633 = vst [vmem:[%s348 + $0x18] sm:$0xff] %v625
          %634 = vst [vmem:[%s348 + $0x20] sm:$0xff] %v626
          %635 = vst [vmem:[%s348 + $0x28] sm:$0xff] %v627
          %636 = vst [vmem:[%s348 + $0x30] sm:$0xff] %v628
          %637 = vst [vmem:[%s348 + $0x38] sm:$0xff] %v629
        $region56: #{tpu_custom_call.1} parent=31 // pred_fallthru
          _
        %s638 = sand.u32 %s153, 1
        %s639 = scalar_lea.sflag [#allocation9], %s638
        %s640 = sand.u32 %s153, 1
        %s641 = smul.addr %s640, 32
        %s642 = scalar_lea.vmem [#allocation13], %s641
        %s643 = sand.u32 %s179, 1
        %s644 = scalar_lea.sflag [#allocation15], %s643
        %s645 = sand.u32 %s179, 1
        %s646 = smul.addr %s645, 64
        %s647 = scalar_lea.vmem [#allocation14], %s646
        // Predicated region
        $region57: #{tpu_custom_call.1} parent=31 // pred_check
          %p648 = pneg %p163
        $region58: #{tpu_custom_call.1} parent=31 // pred_check_branch
          %650 = sbr.rel (%p648) target = $region60
        $region59: #{tpu_custom_call.1} parent=31 // pred_region
          %s651 = smul.u32 8, %s47
          %s653 = ssub.s32 512, 512
          %654 = vsyncadd %s639, %s653
          %s655 = smul.addr %s651, 64
          %s656 = scalar_lea.hbm %s6, %s655
          %s657 = sshll.u32 %s642, 4
          %s658 = int_to_ptr.vmem [resolvable:$true] %s657
          %663 = dma.vmem_to_hbm [thread:$0]  %s658, 512, %s656, %s639, 64, 64, 4
        $region60: #{tpu_custom_call.1} parent=31 // pred_fallthru
          _
        // Predicated region
        $region61: #{tpu_custom_call.1} parent=31 // pred_check
          %p664 = pneg %p189
        $region62: #{tpu_custom_call.1} parent=31 // pred_check_branch
          %666 = sbr.rel (%p664) target = $region64
        $region63: #{tpu_custom_call.1} parent=31 // pred_region
          %s667 = smul.u32 8, %s47
          %s669 = ssub.s32 1024, 1024
          %670 = vsyncadd %s644, %s669
          %s671 = smul.addr %s667, 128
          %s672 = scalar_lea.hbm %s7, %s671
          %s673 = sshll.u32 %s647, 4
          %s674 = int_to_ptr.vmem [resolvable:$true] %s673
          %679 = dma.vmem_to_hbm [thread:$0]  %s674, 1024, %s672, %s644, 128, 128, 8
        $region64: #{tpu_custom_call.1} parent=31 // pred_fallthru
          _
      $region32: #{tpu_custom_call.1} parent=5 // pred_fallthru
        _
      %p680 = scmp.le.s32.totalorder 2, %s38
      // Predicated region
      $region65: #{tpu_custom_call.1} parent=5 // pred_check
        %p681 = pneg %p680
      $region66: #{tpu_custom_call.1} parent=5 // pred_check_branch
        %683 = sbr.rel (%p681) target = $region68
      $region67: #{tpu_custom_call.1} parent=5 // pred_region
        %s684 = ssub.s32 %s38, 2
        // Predicated region
        $region69: #{tpu_custom_call.1} parent=67 // pred_check
          %p685 = pneg %p169
        $region70: #{tpu_custom_call.1} parent=67 // pred_check_branch
          %687 = sbr.rel (%p685) target = $region72
        $region71: #{tpu_custom_call.1} parent=67 // pred_region
          %s688 = sand.u32 %s154, 1
          %s689 = scalar_lea.sflag [#allocation9], %s688
          %s690 = sand.u32 %s154, 1
          %s691 = smul.addr %s690, 32
          %s692 = scalar_lea.vmem [#allocation13], %s691
          %693 = dma.done %s689, 512
        $region72: #{tpu_custom_call.1} parent=67 // pred_fallthru
          _
        // Predicated region
        $region73: #{tpu_custom_call.1} parent=67 // pred_check
          %p694 = pneg %p195
        $region74: #{tpu_custom_call.1} parent=67 // pred_check_branch
          %696 = sbr.rel (%p694) target = $region76
        $region75: #{tpu_custom_call.1} parent=67 // pred_region
          %s697 = sand.u32 %s180, 1
          %s698 = scalar_lea.sflag [#allocation15], %s697
          %s699 = sand.u32 %s180, 1
          %s700 = smul.addr %s699, 64
          %s701 = scalar_lea.vmem [#allocation14], %s700
          %702 = dma.done %s698, 1024
        $region76: #{tpu_custom_call.1} parent=67 // pred_fallthru
          _
      $region68: #{tpu_custom_call.1} parent=5 // pred_fallthru
        _
    $region6: #{tpu_custom_call.1} parent=1 // loop_footer
      %s42 = sadd.s32 1, %s38
    $region7: #{tpu_custom_call.1} parent=1 // loop_footer_branch
      %37 = sbr.rel target = $region3
    $region8: #{tpu_custom_call.1} parent=1 // loop_exit
      _
    %703 = vsyncpa [#allocation8], 1
    %s704 = scalar_lea.sflag [#allocation8], 1
    %705 = vsyncpa %s704, 1
    %706 = vsyncpa [#allocation11], 1
    %s707 = scalar_lea.sflag [#allocation11], 1
    %708 = vsyncpa %s707, 1
    %709 = vsyncpa [#allocation9], 1
    %s710 = scalar_lea.sflag [#allocation9], 1
    %711 = vsyncpa %s710, 1
    %712 = vsyncpa [#allocation15], 1
    %s713 = scalar_lea.sflag [#allocation15], 1
    %714 = vsyncpa %s713, 1

</llo_original>
